<compile_context>
chip_gen: v6e
topology: v6e:2x2x1
jax: 0.10.0
libtpu: 0.0.40
codegen_flags: <defaults>
</compile_context>

<pallas_src>
import jax
import jax.numpy as jnp
from jax import lax
from jax.experimental import pallas as pl
from jax.experimental.pallas import tpu as pltpu

# ---- module "config" (MultiBoxLoss.__init__ args; deterministic, no ckpt) --
NUM_CLASSES = 2          # pyramidBox: face vs background
OVERLAP_THRESH = 0.35
NEGPOS_RATIO = 3
VARIANCE = (0.1, 0.2)    # cfg['variance']

_LANE = 128
_SUB = 8
_ALIGN = _LANE * _SUB    # 1024: keeps both the (P) and flattened (4P) layouts
                         # on full (8,128) vregs and cleanly tileable.


def _round_up(x, m):
    return (x + m - 1) // m * m


# ---------------------------------------------------------------------------
# Ground-truth matching + encoding (glue, plain JAX).
# TODO(synk): the source elides the bodies of match()/matchNoBipartite();
#             the standard SSD bipartite match() is implemented here.
# ---------------------------------------------------------------------------
def _match_single(truths, labels, priors):
    """SSD bipartite `match` + `encode` for one image.

    truths: (O, 4) corner-form GT boxes, labels: (O,), priors: (P, 4) cx,cy,w,h.
    Returns loc_t (P, 4) float32 and conf_t (P,) int32.
    """
    pri_pf = jnp.concatenate(
        [priors[:, :2] - priors[:, 2:] / 2.0,
         priors[:, :2] + priors[:, 2:] / 2.0], axis=1)              # point form

    # jaccard overlaps (O, P)
    max_xy = jnp.minimum(truths[:, None, 2:], pri_pf[None, :, 2:])
    min_xy = jnp.maximum(truths[:, None, :2], pri_pf[None, :, :2])
    wh = jnp.clip(max_xy - min_xy, 0.0, None)
    inter = wh[..., 0] * wh[..., 1]
    area_t = ((truths[:, 2] - truths[:, 0]) *
              (truths[:, 3] - truths[:, 1]))[:, None]
    area_p = ((pri_pf[:, 2] - pri_pf[:, 0]) *
              (pri_pf[:, 3] - pri_pf[:, 1]))[None, :]
    overlaps = inter / (area_t + area_p - inter)

    best_prior_idx = jnp.argmax(overlaps, axis=1)                    # (O,)
    best_truth_overlap = jnp.max(overlaps, axis=0)                   # (P,)
    best_truth_idx = jnp.argmax(overlaps, axis=0)                    # (P,)
    # ensure every gt matches its prior of max overlap
    best_truth_overlap = best_truth_overlap.at[best_prior_idx].set(2.0)
    best_truth_idx = best_truth_idx.at[best_prior_idx].set(
        jnp.arange(truths.shape[0]))

    matches = truths[best_truth_idx]                                 # (P, 4)
    conf = labels[best_truth_idx].astype(jnp.int32) + 1
    conf = jnp.where(best_truth_overlap < OVERLAP_THRESH, 0, conf)

    # encode(matches, priors, variances)
    g_cxcy = (matches[:, :2] + matches[:, 2:]) / 2.0 - priors[:, :2]
    g_cxcy = g_cxcy / (VARIANCE[0] * priors[:, 2:])
    g_wh = (matches[:, 2:] - matches[:, :2]) / priors[:, 2:]
    g_wh = jnp.log(g_wh) / VARIANCE[1]
    loc = jnp.concatenate([g_cxcy, g_wh], axis=1)
    return loc.astype(jnp.float32), conf


# ---------------------------------------------------------------------------
# Pallas kernel: per-prior loss hot path, lane-dense, per-image accumulators.
# ---------------------------------------------------------------------------
def _multibox_loss_kernel(thresh_ref,                         # SMEM (B,) f32
                          loc_p_ref, loc_t_ref,               # (1, R4, 128)
                          ce_ref, posf_ref,                    # (1, R1, 128)
                          loss_l_ref, loss_c_ref):             # (1, 1, 1) each
    b = pl.program_id(0)
    t = pl.program_id(1)

    # per-image init (prior-tile axis is innermost + output block is per-image,
    # so this is megacore-safe with a "parallel" batch axis).
    @pl.when(t == 0)
    def _():
        loss_l_ref[...] = jnp.zeros_like(loss_l_ref)
        loss_c_ref[...] = jnp.zeros_like(loss_c_ref)

    # ---- localization loss: SmoothL1 on the lane-dense flattened (prior*4)
    # layout. Negatives were neutralized wrapper-side (loc_t == loc_p there),
    # so the whole tile sums with no mask.
    d = loc_p_ref[0].astype(jnp.float32) - loc_t_ref[0]
    ad = jnp.abs(d)
    sl1 = jnp.where(ad < 1.0, 0.5 * d * d, ad - 0.5)
    loss_l_ref[...] += jnp.sum(sl1)

    # ---- confidence loss: positives always, negatives above the per-image
    # k-th-largest threshold. Everything tied exactly at `th` is folded into
    # the wrapper-side num_neg * th term, so no counter is needed.
    ce = ce_ref[0]
    posf = posf_ref[0]
    th = thresh_ref[b]
    pos_term = jnp.sum(ce * posf)
    neg_term = jnp.sum(jnp.where((posf == 0.0) & (ce > th), ce - th, 0.0))
    loss_c_ref[...] += pos_term + neg_term


def multibox_loss_pallas(loc_data, conf_data, loc_t, conf_t,
                         negpos_ratio=NEGPOS_RATIO, tile_p=None,
                         max_neg_cap=None):
    """loc_data (B,P,4), conf_data (B,P,2), loc_t (B,P,4) f32, conf_t (B,P) i32.

    tile_p=None -> one tile per image (grid collapses to (B, 1)).
    max_neg_cap: optional static bound on num_neg; enables lax.top_k instead of
    a full sort for the mining threshold (exact as long as num_neg <= cap).
    """
    B, P, C = conf_data.shape
    assert C == 2, "kernel is specialized for NUM_CLASSES == 2 (PyramidBox)"

    # ---- per-prior 2-class cross entropy, once, in the wrapper --------------
    cf = conf_data.astype(jnp.float32)
    c0, c1 = cf[..., 0], cf[..., 1]
    lse = jnp.maximum(c0, c1) + jnp.log1p(jnp.exp(-jnp.abs(c1 - c0)))
    c_at_t = jnp.where(conf_t == 0, c0, c1)
    ce = lse - c_at_t                                       # (B, P) f32, >= 0
    pos = conf_t > 0
    posf = pos.astype(jnp.float32)

    # ---- hard-negative-mining threshold (k-th largest CE per image) ---------
    num_pos = jnp.sum(pos, axis=1).astype(jnp.int32)        # (B,)
    num_neg = jnp.minimum(negpos_ratio * num_pos, P - 1).astype(jnp.int32)
    ce_rank = jnp.where(pos, 0.0, ce)                       # positives zeroed
    if max_neg_cap is not None:
        k = int(min(int(max_neg_cap), P))
        num_neg = jnp.minimum(num_neg, k)
        top_vals = lax.top_k(ce_rank, k)[0]                 # (B, k) descending
        idx = jnp.clip(num_neg - 1, 0, k - 1)
        thresh = jnp.take_along_axis(top_vals, idx[:, None], axis=1)[:, 0]
    else:
        # TODO(synk): for production P (~34k) prefer the top_k path above.
        sorted_desc = -jnp.sort(-ce_rank, axis=1)
        idx = jnp.clip(num_neg - 1, 0, P - 1)
        thresh = jnp.take_along_axis(sorted_desc, idx[:, None], axis=1)[:, 0]
    thresh = jnp.where(num_neg > 0, thresh,
                       jnp.float32(1e30)).astype(jnp.float32)

    # ---- fold the positive mask into the loc target: for negatives the target
    # equals the prediction, so SmoothL1 contributes exactly 0 there.
    loc_f32 = loc_data.astype(jnp.float32)
    loc_t_eff = jnp.where(pos[:, :, None], loc_t.astype(jnp.float32), loc_f32)

    # ---- pad the prior axis; flatten to lane-dense (rows, 128) layouts ------
    if tile_p is None:
        TP = _round_up(P, _ALIGN)
    else:
        TP = max(_ALIGN, _round_up(int(tile_p), _ALIGN))
    Pp = _round_up(P, TP)
    NT = Pp // TP
    pad = Pp - P
    if pad:
        loc_p_pad = jnp.pad(loc_data, ((0, 0), (0, pad), (0, 0)))
        loc_t_eff = jnp.pad(loc_t_eff, ((0, 0), (0, pad), (0, 0)))
        ce = jnp.pad(ce, ((0, 0), (0, pad)))               # ce=0, pos=0 -> never
        posf = jnp.pad(posf, ((0, 0), (0, pad)))           # selected (th >= 0)
    else:
        loc_p_pad = loc_data

    loc_p_flat = loc_p_pad.reshape(B, Pp * 4 // _LANE, _LANE)   # native dtype
    loc_t_flat = loc_t_eff.reshape(B, Pp * 4 // _LANE, _LANE)   # f32
    ce_l = ce.reshape(B, Pp // _LANE, _LANE)
    posf_l = posf.reshape(B, Pp // _LANE, _LANE)

    R4 = TP * 4 // _LANE
    R1 = TP // _LANE
    grid = (B, NT)

    loss_l_part, loss_c_part = pl.pallas_call(
        _multibox_loss_kernel,
        out_shape=(jax.ShapeDtypeStruct((B, 1, 1), jnp.float32),
                   jax.ShapeDtypeStruct((B, 1, 1), jnp.float32)),
        grid_spec=pltpu.PrefetchScalarGridSpec(
            num_scalar_prefetch=0,
            grid=grid,
            in_specs=[
                pl.BlockSpec(memory_space=pltpu.MemorySpace.SMEM),      # thresh
                pl.BlockSpec((1, R4, _LANE), lambda b, t: (b, t, 0)),   # loc_p
                pl.BlockSpec((1, R4, _LANE), lambda b, t: (b, t, 0)),   # loc_t_eff
                pl.BlockSpec((1, R1, _LANE), lambda b, t: (b, t, 0)),   # ce
                pl.BlockSpec((1, R1, _LANE), lambda b, t: (b, t, 0)),   # posf
            ],
            out_specs=(pl.BlockSpec((1, 1, 1), lambda b, t: (b, 0, 0)),
                       pl.BlockSpec((1, 1, 1), lambda b, t: (b, 0, 0))),
        ),
        compiler_params=pltpu.CompilerParams(
            # batch axis parallel (megacore on v7x); prior-tile axis is the
            # per-image accumulation axis -> arbitrary.
            dimension_semantics=("parallel", "arbitrary"),
            vmem_limit_bytes=32 * 1024 * 1024,
        ),
    )(thresh, loc_p_flat, loc_t_flat, ce_l, posf_l)

    # ---- final tiny (B,) math in JAX ----------------------------------------
    n_pos_total = jnp.sum(num_pos)
    n = jnp.where(n_pos_total == 0, jnp.float32(B),
                  n_pos_total.astype(jnp.float32))
    tie_term = jnp.sum(jnp.where(num_neg > 0,
                                 num_neg.astype(jnp.float32) * thresh, 0.0))
    loss_l = jnp.sum(loss_l_part) / n
    loss_c = (jnp.sum(loss_c_part) + tie_term) / n
    return loss_l, loss_c


def multibox_loss_forward(loc_data, conf_data, priors, targets,
                          tile_p=None, max_neg_cap=None):
    """Mirrors MultiBoxLoss.forward((loc, conf, priors), targets)."""
    priors = priors[:loc_data.shape[1], :]
    truths = targets[..., :-1]          # (B, O, 4)
    labels = targets[..., -1]           # (B, O)
    loc_t, conf_t = jax.vmap(_match_single, in_axes=(0, 0, None))(
        truths, labels, priors)
    return multibox_loss_pallas(loc_data, conf_data, loc_t, conf_t,
                                tile_p=tile_p, max_neg_cap=max_neg_cap)


# ---------------------------------------------------------------------------
# Pure-JAX reference with PyTorch rank-based selection (sanity check only).
# ---------------------------------------------------------------------------
def _reference_loss(loc_data, conf_data, loc_t, conf_t,
                    negpos_ratio=NEGPOS_RATIO):
    B, P, C = conf_data.shape
    pos = conf_t > 0
    d = loc_data - loc_t
    ad = jnp.abs(d)
    sl1 = jnp.where(ad < 1.0, 0.5 * d * d, ad - 0.5)
    loss_l = jnp.sum(jnp.where(pos[:, :, None], sl1, 0.0))

    lse = jax.scipy.special.logsumexp(conf_data, axis=-1)
    conf_at_t = jnp.take_along_axis(conf_data, conf_t[:, :, None],
                                    axis=-1)[..., 0]
    ce = lse - conf_at_t
    ce_rank = jnp.where(pos, 0.0, ce)
    li = ce_rank[:, :, None]
    lj = ce_rank[:, None, :]
    ii = jnp.arange(P)[None, :, None]
    jj = jnp.arange(P)[None, None, :]
    rank = jnp.sum(((lj > li) | ((lj == li) & (jj < ii))).astype(jnp.int32),
                   axis=-1)
    num_pos = jnp.sum(pos.astype(jnp.int32), axis=1, keepdims=True)
    num_neg = jnp.minimum(negpos_ratio * num_pos, P - 1)
    neg = rank < num_neg
    sel = pos | neg
    loss_c = jnp.sum(jnp.where(sel, ce, 0.0))
    n = jnp.sum(num_pos)
    nf = jnp.where(n == 0, jnp.float32(B), n.astype(jnp.float32))
    return loss_l / nf, loss_c / nf


if __name__ == "__main__":
    key = jax.random.PRNGKey(0)
    B, P, C, O = 2, 1500, NUM_CLASSES, 3    # P=1500 exercises padding (->2048)
    k1, k2, k3, k4, k5, k6 = jax.random.split(key, 6)

    loc_data = 0.1 * jax.random.normal(k1, (B, P, 4), jnp.float32)
    conf_data = jax.random.normal(k2, (B, P, C), jnp.float32)

    # priors in center-size form
    cxcy = jax.random.uniform(k3, (P, 2), minval=0.05, maxval=0.95)
    wh = jax.random.uniform(k4, (P, 2), minval=0.05, maxval=0.30)
    priors = jnp.concatenate([cxcy, wh], axis=1).astype(jnp.float32)

    # ground-truth targets: (B, O, 5) = [x1, y1, x2, y2, label]
    gt_c = jax.random.uniform(k5, (B, O, 2), minval=0.2, maxval=0.8)
    gt_wh = jax.random.uniform(k6, (B, O, 2), minval=0.1, maxval=0.3)
    gt_boxes = jnp.concatenate([gt_c - gt_wh / 2.0, gt_c + gt_wh / 2.0],
                               axis=-1)
    gt_labels = jnp.zeros((B, O, 1), jnp.float32)   # class 0 (face)
    targets = jnp.concatenate([gt_boxes, gt_labels], axis=-1).astype(jnp.float32)

    # (a) multi-tile accumulation path: tile_p=1024 -> Pp=2048, 2 tiles/image
    loss_l, loss_c = multibox_loss_forward(loc_data, conf_data, priors,
                                           targets, tile_p=1024)
    jax.block_until_ready((loss_l, loss_c))

    # (b) default single-tile-per-image path + top_k threshold
    loss_l2, loss_c2 = multibox_loss_forward(loc_data, conf_data, priors,
                                             targets, tile_p=None,
                                             max_neg_cap=P)
    jax.block_until_ready((loss_l2, loss_c2))

    # sanity check against a pure-JAX rank-based reference (PyTorch semantics)
    loc_t, conf_t = jax.vmap(_match_single, in_axes=(0, 0, None))(
        targets[..., :-1], targets[..., -1], priors[:P, :])
    ref_l, ref_c = _reference_loss(loc_data, conf_data, loc_t, conf_t)

    def _close(a, b):
        a = float(a); b = float(b)
        return abs(a - b) <= 1e-3 + 1e-3 * abs(b)

    assert _close(loss_l, ref_l), (float(loss_l), float(ref_l))
    assert _close(loss_c, ref_c), (float(loss_c), float(ref_c))
    assert _close(loss_l2, ref_l), (float(loss_l2), float(ref_l))
    assert _close(loss_c2, ref_c), (float(loss_c2), float(ref_c))

    print("KERNEL_OK")
</pallas_src>

<mosaic_0001>
module attributes {stable_mosaic.version = 11 : i64} {
  func.func @_multibox_loss_kernel(%arg0: i32, %arg1: i32, %arg2: memref<2xf32, #tpu.memory_space<smem>>, %arg3: memref<1x32x128xf32, #tpu.memory_space<vmem>>, %arg4: memref<1x32x128xf32, #tpu.memory_space<vmem>>, %arg5: memref<1x8x128xf32, #tpu.memory_space<vmem>>, %arg6: memref<1x8x128xf32, #tpu.memory_space<vmem>>, %arg7: memref<1x1x1xf32, #tpu.memory_space<vmem>>, %arg8: memref<1x1x1xf32, #tpu.memory_space<vmem>>) attributes {dimension_semantics = [#tpu.dimension_semantics<parallel>, #tpu.dimension_semantics<arbitrary>], iteration_bounds = array<i64: 2, 2>, scalar_prefetch = 0 : i64, scratch_operands = 0 : i64, tpu.core_type = #tpu.core_type<tc>, window_params = [{transform_indices = @transform_0, window_bounds = array<i64: 2>}, {transform_indices = @transform_1, window_bounds = array<i64: 1, 32, 128>}, {transform_indices = @transform_2, window_bounds = array<i64: 1, 32, 128>}, {transform_indices = @transform_3, window_bounds = array<i64: 1, 8, 128>}, {transform_indices = @transform_4, window_bounds = array<i64: 1, 8, 128>}, {transform_indices = @transform_5, window_bounds = array<i64: 1, 1, 1>}, {transform_indices = @transform_6, window_bounds = array<i64: 1, 1, 1>}]} {
    %c0_i32 = arith.constant 0 : i32
    %0 = arith.cmpi eq, %arg1, %c0_i32 : i32
    %1 = arith.extui %0 : i1 to i32
    %c0_i32_0 = arith.constant 0 : i32
    %2 = arith.cmpi ne, %1, %c0_i32_0 : i32
    scf.if %2 {
      %cst_31 = arith.constant 0.000000e+00 : f32
      %54 = vector.broadcast %cst_31 : f32 to vector<1x1x1xf32>
      %c0_32 = arith.constant 0 : index
      %c0_33 = arith.constant 0 : index
      %c0_34 = arith.constant 0 : index
      %55 = vector.load %arg7[%c0_32, %c0_33, %c0_34] : memref<1x1x1xf32, #tpu.memory_space<vmem>>, vector<1x1x1xf32>
      tpu.vector_store %arg7[%c0_32, %c0_33, %c0_34], %54 {strides = array<i32>} : memref<1x1x1xf32, #tpu.memory_space<vmem>>, vector<1x1x1xf32>,
      %cst_35 = arith.constant 0.000000e+00 : f32
      %56 = vector.broadcast %cst_35 : f32 to vector<1x1x1xf32>
      %c0_36 = arith.constant 0 : index
      %c0_37 = arith.constant 0 : index
      %c0_38 = arith.constant 0 : index
      %57 = vector.load %arg8[%c0_36, %c0_37, %c0_38] : memref<1x1x1xf32, #tpu.memory_space<vmem>>, vector<1x1x1xf32>
      tpu.vector_store %arg8[%c0_36, %c0_37, %c0_38], %56 {strides = array<i32>} : memref<1x1x1xf32, #tpu.memory_space<vmem>>, vector<1x1x1xf32>,
    } else {
    }
    %c0 = arith.constant 0 : index
    %c0_1 = arith.constant 0 : index
    %c0_2 = arith.constant 0 : index
    %3 = vector.load %arg3[%c0, %c0_1, %c0_2] : memref<1x32x128xf32, #tpu.memory_space<vmem>>, vector<1x32x128xf32>
    %4 = vector.shape_cast %3 : vector<1x32x128xf32> to vector<32x128xf32>
    %c0_3 = arith.constant 0 : index
    %c0_4 = arith.constant 0 : index
    %c0_5 = arith.constant 0 : index
    %5 = vector.load %arg4[%c0_3, %c0_4, %c0_5] : memref<1x32x128xf32, #tpu.memory_space<vmem>>, vector<1x32x128xf32>
    %6 = vector.shape_cast %5 : vector<1x32x128xf32> to vector<32x128xf32>
    %7 = arith.subf %4, %6 : vector<32x128xf32>
    %8 = math.absf %7 : vector<32x128xf32>
    %cst = arith.constant 1.000000e+00 : f32
    %9 = vector.broadcast %cst : f32 to vector<32x128xf32>
    %10 = arith.cmpf olt, %8, %9 : vector<32x128xf32>
    %cst_6 = arith.constant 5.000000e-01 : f32
    %11 = vector.broadcast %cst_6 : f32 to vector<32x128xf32>
    %12 = arith.mulf %11, %7 : vector<32x128xf32>
    %13 = arith.mulf %12, %7 : vector<32x128xf32>
    %cst_7 = arith.constant 5.000000e-01 : f32
    %14 = vector.broadcast %cst_7 : f32 to vector<32x128xf32>
    %15 = arith.subf %8, %14 : vector<32x128xf32>
    %16 = arith.select %10, %13, %15 : vector<32x128xi1>, vector<32x128xf32>
    %c0_8 = arith.constant 0 : index
    %c0_9 = arith.constant 0 : index
    %c0_10 = arith.constant 0 : index
    %17 = vector.load %arg7[%c0_8, %c0_9, %c0_10] : memref<1x1x1xf32, #tpu.memory_space<vmem>>, vector<1x1x1xf32>
    %18 = vector.shape_cast %16 : vector<32x128xf32> to vector<1x32x128xf32>
    %cst_11 = arith.constant dense<0.000000e+00> : vector<1xf32>
    %19 = vector.multi_reduction <add>, %18, %cst_11 [1, 2] : vector<1x32x128xf32> to vector<1xf32>
    %20 = vector.shape_cast %19 : vector<1xf32> to vector<1x1x1xf32>
    %21 = vector.extract %20[0, 0, 0] : f32 from vector<1x1x1xf32>
    %22 = vector.broadcast %21 : f32 to vector<1x1x1xf32>
    %23 = arith.addf %17, %22 : vector<1x1x1xf32>
    %c0_12 = arith.constant 0 : index
    %c0_13 = arith.constant 0 : index
    %c0_14 = arith.constant 0 : index
    %24 = vector.load %arg7[%c0_12, %c0_13, %c0_14] : memref<1x1x1xf32, #tpu.memory_space<vmem>>, vector<1x1x1xf32>
    tpu.vector_store %arg7[%c0_12, %c0_13, %c0_14], %23 {strides = array<i32>} : memref<1x1x1xf32, #tpu.memory_space<vmem>>, vector<1x1x1xf32>,
    %c0_15 = arith.constant 0 : index
    %c0_16 = arith.constant 0 : index
    %c0_17 = arith.constant 0 : index
    %25 = vector.load %arg5[%c0_15, %c0_16, %c0_17] : memref<1x8x128xf32, #tpu.memory_space<vmem>>, vector<1x8x128xf32>
    %26 = vector.shape_cast %25 : vector<1x8x128xf32> to vector<8x128xf32>
    %c0_18 = arith.constant 0 : index
    %c0_19 = arith.constant 0 : index
    %c0_20 = arith.constant 0 : index
    %27 = vector.load %arg6[%c0_18, %c0_19, %c0_20] : memref<1x8x128xf32, #tpu.memory_space<vmem>>, vector<1x8x128xf32>
    %28 = vector.shape_cast %27 : vector<1x8x128xf32> to vector<8x128xf32>
    %29 = arith.index_cast %arg0 : i32 to index
    %30 = memref.load %arg2[%29] : memref<2xf32, #tpu.memory_space<smem>>
    %31 = arith.mulf %26, %28 : vector<8x128xf32>
    %32 = vector.shape_cast %31 : vector<8x128xf32> to vector<1x8x128xf32>
    %cst_21 = arith.constant dense<0.000000e+00> : vector<1xf32>
    %33 = vector.multi_reduction <add>, %32, %cst_21 [1, 2] : vector<1x8x128xf32> to vector<1xf32>
    %34 = vector.shape_cast %33 : vector<1xf32> to vector<1x1x1xf32>
    %35 = vector.extract %34[0, 0, 0] : f32 from vector<1x1x1xf32>
    %cst_22 = arith.constant 0.000000e+00 : f32
    %36 = vector.broadcast %cst_22 : f32 to vector<8x128xf32>
    %37 = arith.cmpf oeq, %28, %36 : vector<8x128xf32>
    %38 = vector.broadcast %30 : f32 to vector<8x128xf32>
    %39 = arith.cmpf ogt, %26, %38 : vector<8x128xf32>
    %40 = arith.andi %37, %39 : vector<8x128xi1>
    %41 = vector.broadcast %30 : f32 to vector<8x128xf32>
    %42 = arith.subf %26, %41 : vector<8x128xf32>
    %cst_23 = arith.constant 0.000000e+00 : f32
    %43 = vector.broadcast %cst_23 : f32 to vector<8x128xf32>
    %44 = arith.select %40, %42, %43 : vector<8x128xi1>, vector<8x128xf32>
    %45 = vector.shape_cast %44 : vector<8x128xf32> to vector<1x8x128xf32>
    %cst_24 = arith.constant dense<0.000000e+00> : vector<1xf32>
    %46 = vector.multi_reduction <add>, %45, %cst_24 [1, 2] : vector<1x8x128xf32> to vector<1xf32>
    %47 = vector.shape_cast %46 : vector<1xf32> to vector<1x1x1xf32>
    %48 = vector.extract %47[0, 0, 0] : f32 from vector<1x1x1xf32>
    %c0_25 = arith.constant 0 : index
    %c0_26 = arith.constant 0 : index
    %c0_27 = arith.constant 0 : index
    %49 = vector.load %arg8[%c0_25, %c0_26, %c0_27] : memref<1x1x1xf32, #tpu.memory_space<vmem>>, vector<1x1x1xf32>
    %50 = arith.addf %35, %48 : f32
    %51 = vector.broadcast %50 : f32 to vector<1x1x1xf32>
    %52 = arith.addf %49, %51 : vector<1x1x1xf32>
    %c0_28 = arith.constant 0 : index
    %c0_29 = arith.constant 0 : index
    %c0_30 = arith.constant 0 : index
    %53 = vector.load %arg8[%c0_28, %c0_29, %c0_30] : memref<1x1x1xf32, #tpu.memory_space<vmem>>, vector<1x1x1xf32>
    tpu.vector_store %arg8[%c0_28, %c0_29, %c0_30], %52 {strides = array<i32>} : memref<1x1x1xf32, #tpu.memory_space<vmem>>, vector<1x1x1xf32>,
    return
  }
  func.func @transform_0(%arg0: i32, %arg1: i32) -> i32 {
    %c0_i32 = arith.constant 0 : i32
    %c0_i32_0 = arith.constant 0 : i32
    return %c0_i32 : i32
  }
  func.func @transform_1(%arg0: i32, %arg1: i32) -> (i32, i32, i32) {
    %c0_i32 = arith.constant 0 : i32
    %c0_i32_0 = arith.constant 0 : i32
    return %arg0, %arg1, %c0_i32 : i32, i32, i32
  }
  func.func @transform_2(%arg0: i32, %arg1: i32) -> (i32, i32, i32) {
    %c0_i32 = arith.constant 0 : i32
    %c0_i32_0 = arith.constant 0 : i32
    return %arg0, %arg1, %c0_i32 : i32, i32, i32
  }
  func.func @transform_3(%arg0: i32, %arg1: i32) -> (i32, i32, i32) {
    %c0_i32 = arith.constant 0 : i32
    %c0_i32_0 = arith.constant 0 : i32
    return %arg0, %arg1, %c0_i32 : i32, i32, i32
  }
  func.func @transform_4(%arg0: i32, %arg1: i32) -> (i32, i32, i32) {
    %c0_i32 = arith.constant 0 : i32
    %c0_i32_0 = arith.constant 0 : i32
    return %arg0, %arg1, %c0_i32 : i32, i32, i32
  }
  func.func @transform_5(%arg0: i32, %arg1: i32) -> (i32, i32, i32) {
    %c0_i32 = arith.constant 0 : i32
    %c0_i32_0 = arith.constant 0 : i32
    %c0_i32_1 = arith.constant 0 : i32
    return %arg0, %c0_i32, %c0_i32_0 : i32, i32, i32
  }
  func.func @transform_6(%arg0: i32, %arg1: i32) -> (i32, i32, i32) {
    %c0_i32 = arith.constant 0 : i32
    %c0_i32_0 = arith.constant 0 : i32
    %c0_i32_1 = arith.constant 0 : i32
    return %arg0, %c0_i32, %c0_i32_0 : i32, i32, i32
  }
}

</mosaic_0001>

<llo_original>
// kernel: tpu_custom_call.1
$region0: #{tpu_custom_call.1}
  #allocation0 [shape = 'u32[]', space=smem, size = 0x4, offset = 0x4, fixed_abs, tag = 'smem constant byte address 0x4 - core index']
  #allocation1 [shape = 'u32[144,128]{1,0:T(1,128)}', space=vmem, size = 0x12000, scoped, tag = 'internal scratch']
  %s0 = inlined_call_operand.hbm [shape: f32[2], index: 0, kind: input, shape index: {}]
  %s1 = inlined_call_operand.hbm [shape: f32[2,64,128], index: 1, kind: input, shape index: {}]
  %s2 = inlined_call_operand.hbm [shape: f32[2,64,128], index: 2, kind: input, shape index: {}]
  %s3 = inlined_call_operand.hbm [shape: f32[2,16,128], index: 3, kind: input, shape index: {}]
  %s4 = inlined_call_operand.hbm [shape: f32[2,16,128], index: 4, kind: input, shape index: {}]
  %s5 = inlined_call_operand.vmem [shape: f32[2,1,1], index: 5, kind: output, shape index: {0}]
  %s6 = inlined_call_operand.vmem [shape: f32[2,1,1], index: 6, kind: output, shape index: {1}]
  %7 = xla_tuple %s5, %s6
  %s8 = sld [smem:[#allocation0]]
  $region85: #{tpu_custom_call.1} parent=0
    _
  %s10 = ssub.s32 1, %s8
  %s11 = scalar_select 0, %s10, %s8
  $region1: #{tpu_custom_call.1} parent=0
    #allocation2 [shape = 'u8[512]{0}', space=smem, size = 0x200, scoped, tag = 'input window, operand 0, single buffered']
    #allocation3 [shape = 's32[2]{0}', space=sflag, size = 0x8, scoped, tag = 'scoped memory for tpu_custom_call.1']
    #allocation4 [shape = 's32[2]{0}', space=sflag, size = 0x8, scoped, tag = 'scoped memory for tpu_custom_call.1']
    #allocation5 [shape = 'u8[32768]{0}', space=vmem, size = 0x8000, scoped, tag = 'input window, operand 1']
    #allocation6 [shape = 'u8[32768]{0}', space=vmem, size = 0x8000, scoped, tag = 'input window, operand 2']
    #allocation7 [shape = 's32[2]{0}', space=sflag, size = 0x8, scoped, tag = 'scoped memory for tpu_custom_call.1']
    #allocation8 [shape = 'u8[8192]{0}', space=vmem, size = 0x2000, scoped, tag = 'input window, operand 3']
    #allocation9 [shape = 'u8[8192]{0}', space=vmem, size = 0x2000, scoped, tag = 'input window, operand 4']
    #allocation10 [shape = 's32[2]{0}', space=sflag, size = 0x8, scoped, tag = 'scoped memory for tpu_custom_call.1']
    %12 = vsyncpa [#allocation4], 0
    %13 = vsyncpa [#allocation3], 0
    %s14 = scalar_lea.sflag [#allocation3], 1
    %15 = vsyncpa %s14, 0
    %16 = vsyncpa [#allocation7], 0
    %s17 = scalar_lea.sflag [#allocation7], 1
    %18 = vsyncpa %s17, 0
    %19 = vsyncpa [#allocation10], 0
    %s20 = scalar_lea.sflag [#allocation10], 1
    %21 = vsyncpa %s20, 0
    loop: start=0, step=1, limit=6
    $region2: #{tpu_custom_call.1} parent=1 // loop_pre_header
      _
    $region3: #{tpu_custom_call.1} parent=1 // loop_header
      %s23 = sphi 0, %s27
      %p24 = scmp.ge.s32.totalorder %s23, 6
      %s30 = sphi 0, %s42
      %s31 = sphi 0, %s38
      %s32 = sphi 0, %s30
      %s33 = sphi 0, %s31
      %s34 = sphi 0, %s32
      %s35 = sphi 0, %s33
      %s43 = sphi 0, %s43
      %s45 = sphi 0, %s43
      %s46 = sphi 0, %s45
      %s60 = sphi 0, %s46
      %s68 = sphi 0, %s70
      %s71 = sphi 0, %s68
      %s72 = sphi 0, %s71
      %s88 = sphi 0, %s72
      %s96 = sphi 0, %s98
      %s99 = sphi 0, %s96
      %s100 = sphi 0, %s99
      %s116 = sphi 0, %s100
      %s124 = sphi 0, %s126
      %s127 = sphi 0, %s124
      %s128 = sphi 0, %s127
      %s144 = sphi 0, %s128
      %s152 = sphi 0, %s154
      %s155 = sphi 0, %s152
      %s156 = sphi 0, %s155
      %s172 = sphi 0, %s156
      %s178 = sphi 0, %s180
      %s181 = sphi 0, %s178
      %s182 = sphi 0, %s181
      %s198 = sphi 0, %s182
      %s204 = sphi 0, %s206
      %s207 = sphi 0, %s204
      %s208 = sphi 0, %s207
      %s224 = sphi 0, %s208
    $region4: #{tpu_custom_call.1} parent=1 // loop_header_branch
      %26 = sbr.rel (%p24) target = $region8
    $region5: #{tpu_custom_call.1} parent=1 // loop_body
      %s28 = ssub.s32 %s23, 1
      %s29 = ssub.s32 %s23, 2
      %s36 = sadd.s32 1, %s31
      %p37 = scmp.ge.s32.totalorder %s36, 2
      %s38 = scalar_select %p37, 0, %s36
      %s39 = sadd.s32 1, %s30
      %s40 = scalar_select %p37, %s39, %s30
      %p41 = scmp.ge.s32.totalorder %s40, 2
      %s42 = scalar_select %p41, 0, %s40
      %s44 = sadd.s32 %s43, 1
      %p47 = scmp.eq.s32.totalorder %s23, 3
      %p48 = scmp.ne.s32.totalorder %s43, %s45
      %p49 = scmp.eq.s32.totalorder %s23, 0
      %p50 = por %p48, %p49
      %p51 = scmp.ne.s32.totalorder %s43, %s45
      %p52 = scmp.eq.s32.totalorder %s28, 3
      %p53 = por %p51, %p52
      %p54 = scmp.ne.s32.totalorder %s45, %s46
      %p55 = scmp.eq.s32.totalorder %s28, 0
      %p56 = por %p54, %p55
      %p57 = scmp.ne.s32.totalorder %s45, %s46
      %p58 = scmp.eq.s32.totalorder %s29, 3
      %p59 = por %p57, %p58
      %p61 = scmp.ne.s32.totalorder %s46, %s60
      %p62 = scmp.eq.s32.totalorder %s29, 0
      %p63 = por %p61, %p62
      %s64 = ssub.s32 %s30, %s42
      %s65 = ssub.s32 %s31, %s38
      %s66 = sor.u32 %s64, %s65
      %p67 = scmp.eq.s32.totalorder %s66, 0
      %s69 = sadd.s32 %s68, 1
      %s70 = scalar_select %p67, %s68, %s69
      %p73 = pneg %p67
      %p74 = scmp.eq.s32.totalorder %s23, 3
      %p75 = por %p73, %p74
      %p76 = scmp.ne.s32.totalorder %s68, %s71
      %p77 = scmp.eq.s32.totalorder %s23, 0
      %p78 = por %p76, %p77
      %p79 = scmp.ne.s32.totalorder %s68, %s71
      %p80 = scmp.eq.s32.totalorder %s28, 3
      %p81 = por %p79, %p80
      %p82 = scmp.ne.s32.totalorder %s71, %s72
      %p83 = scmp.eq.s32.totalorder %s28, 0
      %p84 = por %p82, %p83
      %p85 = scmp.ne.s32.totalorder %s71, %s72
      %p86 = scmp.eq.s32.totalorder %s29, 3
      %p87 = por %p85, %p86
      %p89 = scmp.ne.s32.totalorder %s72, %s88
      %p90 = scmp.eq.s32.totalorder %s29, 0
      %p91 = por %p89, %p90
      %s92 = ssub.s32 %s30, %s42
      %s93 = ssub.s32 %s31, %s38
      %s94 = sor.u32 %s92, %s93
      %p95 = scmp.eq.s32.totalorder %s94, 0
      %s97 = sadd.s32 %s96, 1
      %s98 = scalar_select %p95, %s96, %s97
      %p101 = pneg %p95
      %p102 = scmp.eq.s32.totalorder %s23, 3
      %p103 = por %p101, %p102
      %p104 = scmp.ne.s32.totalorder %s96, %s99
      %p105 = scmp.eq.s32.totalorder %s23, 0
      %p106 = por %p104, %p105
      %p107 = scmp.ne.s32.totalorder %s96, %s99
      %p108 = scmp.eq.s32.totalorder %s28, 3
      %p109 = por %p107, %p108
      %p110 = scmp.ne.s32.totalorder %s99, %s100
      %p111 = scmp.eq.s32.totalorder %s28, 0
      %p112 = por %p110, %p111
      %p113 = scmp.ne.s32.totalorder %s99, %s100
      %p114 = scmp.eq.s32.totalorder %s29, 3
      %p115 = por %p113, %p114
      %p117 = scmp.ne.s32.totalorder %s100, %s116
      %p118 = scmp.eq.s32.totalorder %s29, 0
      %p119 = por %p117, %p118
      %s120 = ssub.s32 %s30, %s42
      %s121 = ssub.s32 %s31, %s38
      %s122 = sor.u32 %s120, %s121
      %p123 = scmp.eq.s32.totalorder %s122, 0
      %s125 = sadd.s32 %s124, 1
      %s126 = scalar_select %p123, %s124, %s125
      %p129 = pneg %p123
      %p130 = scmp.eq.s32.totalorder %s23, 3
      %p131 = por %p129, %p130
      %p132 = scmp.ne.s32.totalorder %s124, %s127
      %p133 = scmp.eq.s32.totalorder %s23, 0
      %p134 = por %p132, %p133
      %p135 = scmp.ne.s32.totalorder %s124, %s127
      %p136 = scmp.eq.s32.totalorder %s28, 3
      %p137 = por %p135, %p136
      %p138 = scmp.ne.s32.totalorder %s127, %s128
      %p139 = scmp.eq.s32.totalorder %s28, 0
      %p140 = por %p138, %p139
      %p141 = scmp.ne.s32.totalorder %s127, %s128
      %p142 = scmp.eq.s32.totalorder %s29, 3
      %p143 = por %p141, %p142
      %p145 = scmp.ne.s32.totalorder %s128, %s144
      %p146 = scmp.eq.s32.totalorder %s29, 0
      %p147 = por %p145, %p146
      %s148 = ssub.s32 %s30, %s42
      %s149 = ssub.s32 %s31, %s38
      %s150 = sor.u32 %s148, %s149
      %p151 = scmp.eq.s32.totalorder %s150, 0
      %s153 = sadd.s32 %s152, 1
      %s154 = scalar_select %p151, %s152, %s153
      %p157 = pneg %p151
      %p158 = scmp.eq.s32.totalorder %s23, 3
      %p159 = por %p157, %p158
      %p160 = scmp.ne.s32.totalorder %s152, %s155
      %p161 = scmp.eq.s32.totalorder %s23, 0
      %p162 = por %p160, %p161
      %p163 = scmp.ne.s32.totalorder %s152, %s155
      %p164 = scmp.eq.s32.totalorder %s28, 3
      %p165 = por %p163, %p164
      %p166 = scmp.ne.s32.totalorder %s155, %s156
      %p167 = scmp.eq.s32.totalorder %s28, 0
      %p168 = por %p166, %p167
      %p169 = scmp.ne.s32.totalorder %s155, %s156
      %p170 = scmp.eq.s32.totalorder %s29, 3
      %p171 = por %p169, %p170
      %p173 = scmp.ne.s32.totalorder %s156, %s172
      %p174 = scmp.eq.s32.totalorder %s29, 0
      %p175 = por %p173, %p174
      %s176 = ssub.s32 %s30, %s42
      %p177 = scmp.eq.s32.totalorder %s176, 0
      %s179 = sadd.s32 %s178, 1
      %s180 = scalar_select %p177, %s178, %s179
      %p183 = pneg %p177
      %p184 = scmp.eq.s32.totalorder %s23, 3
      %p185 = por %p183, %p184
      %p186 = scmp.ne.s32.totalorder %s178, %s181
      %p187 = scmp.eq.s32.totalorder %s23, 0
      %p188 = por %p186, %p187
      %p189 = scmp.ne.s32.totalorder %s178, %s181
      %p190 = scmp.eq.s32.totalorder %s28, 3
      %p191 = por %p189, %p190
      %p192 = scmp.ne.s32.totalorder %s181, %s182
      %p193 = scmp.eq.s32.totalorder %s28, 0
      %p194 = por %p192, %p193
      %p195 = scmp.ne.s32.totalorder %s181, %s182
      %p196 = scmp.eq.s32.totalorder %s29, 3
      %p197 = por %p195, %p196
      %p199 = scmp.ne.s32.totalorder %s182, %s198
      %p200 = scmp.eq.s32.totalorder %s29, 0
      %p201 = por %p199, %p200
      %s202 = ssub.s32 %s30, %s42
      %p203 = scmp.eq.s32.totalorder %s202, 0
      %s205 = sadd.s32 %s204, 1
      %s206 = scalar_select %p203, %s204, %s205
      %p209 = pneg %p203
      %p210 = scmp.eq.s32.totalorder %s23, 3
      %p211 = por %p209, %p210
      %p212 = scmp.ne.s32.totalorder %s204, %s207
      %p213 = scmp.eq.s32.totalorder %s23, 0
      %p214 = por %p212, %p213
      %p215 = scmp.ne.s32.totalorder %s204, %s207
      %p216 = scmp.eq.s32.totalorder %s28, 3
      %p217 = por %p215, %p216
      %p218 = scmp.ne.s32.totalorder %s207, %s208
      %p219 = scmp.eq.s32.totalorder %s28, 0
      %p220 = por %p218, %p219
      %p221 = scmp.ne.s32.totalorder %s207, %s208
      %p222 = scmp.eq.s32.totalorder %s29, 3
      %p223 = por %p221, %p222
      %p225 = scmp.ne.s32.totalorder %s208, %s224
      %p226 = scmp.eq.s32.totalorder %s29, 0
      %p227 = por %p225, %p226
      %p228 = scmp.le.s32.totalorder 1, %s23
      %p229 = scmp.lt.s32.totalorder %s23, 5
      %p230 = pnand %p228, %p229
      %p231 = pneg %p230
      // Predicated region
      $region9: #{tpu_custom_call.1} parent=5 // pred_check
        _
      $region10: #{tpu_custom_call.1} parent=5 // pred_check_branch
        %233 = sbr.rel (%p230) target = $region12
      $region11: #{tpu_custom_call.1} parent=5 // pred_region
        %s234 = ssub.s32 %s23, 1
        // Predicated region
        $region13: #{tpu_custom_call.1} parent=11 // pred_check
          %p235 = pneg %p56
        $region14: #{tpu_custom_call.1} parent=11 // pred_check_branch
          %237 = sbr.rel (%p235) target = $region16
        $region15: #{tpu_custom_call.1} parent=11 // pred_region
          %s239 = ssub.s32 16, 16
          %240 = vsyncadd [#allocation4], %s239
          %243 = dma.hbm_to_smem %s0, 16, [#allocation2], [#allocation4]
        $region16: #{tpu_custom_call.1} parent=11 // pred_fallthru
          _
      $region12: #{tpu_custom_call.1} parent=5 // pred_fallthru
        _
      %p244 = scmp.lt.s32.totalorder %s23, 4
      // Predicated region
      $region17: #{tpu_custom_call.1} parent=5 // pred_check
        %p245 = pneg %p244
      $region18: #{tpu_custom_call.1} parent=5 // pred_check_branch
        %247 = sbr.rel (%p245) target = $region20
      $region19: #{tpu_custom_call.1} parent=5 // pred_region
        // Predicated region
        $region21: #{tpu_custom_call.1} parent=19 // pred_check
          %p248 = pneg %p78
        $region22: #{tpu_custom_call.1} parent=19 // pred_check_branch
          %250 = sbr.rel (%p248) target = $region24
        $region23: #{tpu_custom_call.1} parent=19 // pred_region
          %s251 = sand.u32 %s68, 1
          %s252 = scalar_lea.sflag [#allocation3], %s251
          %s253 = sand.u32 %s68, 1
          %s254 = smul.addr %s253, 32
          %s255 = scalar_lea.vmem [#allocation5], %s254
          %s256 = smul.u32 4, %s31
          %s258 = ssub.s32 512, 512
          %259 = vsyncadd %s252, %s258
          %s260 = smul.addr %s30, 8
          %s261 = sadd.s32 %s256, %s260
          %s262 = smul.addr %s261, 128
          %s263 = scalar_lea.hbm %s1, %s262
          %s264 = sshll.u32 %s255, 4
          %s265 = int_to_ptr.vmem [resolvable:$true] %s264
          %270 = dma.hbm_to_vmem [thread:$0]  %s263, 512, %s265, %s252, 128, 128, 8
        $region24: #{tpu_custom_call.1} parent=19 // pred_fallthru
          _
        // Predicated region
        $region25: #{tpu_custom_call.1} parent=19 // pred_check
          %p271 = pneg %p106
        $region26: #{tpu_custom_call.1} parent=19 // pred_check_branch
          %273 = sbr.rel (%p271) target = $region28
        $region27: #{tpu_custom_call.1} parent=19 // pred_region
          %s274 = sand.u32 %s23, 1
          %s275 = scalar_lea.sflag [#allocation7], %s274
          %s276 = sand.u32 %s96, 1
          %s277 = smul.addr %s276, 32
          %s278 = scalar_lea.vmem [#allocation6], %s277
          %s279 = smul.u32 4, %s31
          %s281 = ssub.s32 512, 512
          %282 = vsyncadd %s275, %s281
          %s283 = smul.addr %s30, 8
          %s284 = sadd.s32 %s279, %s283
          %s285 = smul.addr %s284, 128
          %s286 = scalar_lea.hbm %s2, %s285
          %s287 = sshll.u32 %s278, 4
          %s288 = int_to_ptr.vmem [resolvable:$true] %s287
          %293 = dma.hbm_to_vmem [thread:$0]  %s286, 512, %s288, %s275, 128, 128, 8
        $region28: #{tpu_custom_call.1} parent=19 // pred_fallthru
          _
        // Predicated region
        $region29: #{tpu_custom_call.1} parent=19 // pred_check
          %p294 = pneg %p134
        $region30: #{tpu_custom_call.1} parent=19 // pred_check_branch
          %296 = sbr.rel (%p294) target = $region32
        $region31: #{tpu_custom_call.1} parent=19 // pred_region
          %s297 = sand.u32 %s23, 1
          %s298 = scalar_lea.sflag [#allocation7], %s297
          %s299 = sand.u32 %s124, 1
          %s300 = smul.addr %s299, 8
          %s301 = scalar_lea.vmem [#allocation8], %s300
          %s303 = ssub.s32 128, 128
          %304 = vsyncadd %s298, %s303
          %s305 = smul.addr %s30, 2
          %s306 = sadd.s32 %s31, %s305
          %s307 = smul.addr %s306, 128
          %s308 = scalar_lea.hbm %s3, %s307
          %s310 = sshll.u32 %s301, 4
          %s311 = int_to_ptr.vmem [resolvable:$true] %s310
          %313 = dma.hbm_to_vmem [thread:$0]  %s308, 128, %s311, %s298
        $region32: #{tpu_custom_call.1} parent=19 // pred_fallthru
          _
        // Predicated region
        $region33: #{tpu_custom_call.1} parent=19 // pred_check
          %p314 = pneg %p162
        $region34: #{tpu_custom_call.1} parent=19 // pred_check_branch
          %316 = sbr.rel (%p314) target = $region36
        $region35: #{tpu_custom_call.1} parent=19 // pred_region
          %s317 = sand.u32 %s152, 1
          %s318 = scalar_lea.sflag [#allocation10], %s317
          %s319 = sand.u32 %s152, 1
          %s320 = smul.addr %s319, 8
          %s321 = scalar_lea.vmem [#allocation9], %s320
          %s323 = ssub.s32 128, 128
          %324 = vsyncadd %s318, %s323
          %s325 = smul.addr %s30, 2
          %s326 = sadd.s32 %s31, %s325
          %s327 = smul.addr %s326, 128
          %s328 = scalar_lea.hbm %s4, %s327
          %s330 = sshll.u32 %s321, 4
          %s331 = int_to_ptr.vmem [resolvable:$true] %s330
          %333 = dma.hbm_to_vmem [thread:$0]  %s328, 128, %s331, %s318
        $region36: #{tpu_custom_call.1} parent=19 // pred_fallthru
          _
      $region20: #{tpu_custom_call.1} parent=5 // pred_fallthru
        _
      %p334 = scmp.le.s32.totalorder 1, %s23
      %p335 = scmp.lt.s32.totalorder %s23, 5
      %p336 = pnand %p334, %p335
      %p337 = pneg %p336
      // Predicated region
      $region37: #{tpu_custom_call.1} parent=5 // pred_check
        _
      $region38: #{tpu_custom_call.1} parent=5 // pred_check_branch
        %339 = sbr.rel (%p336) target = $region40
      $region39: #{tpu_custom_call.1} parent=5 // pred_region
        %s340 = ssub.s32 %s23, 1
        // Predicated region
        $region41: #{tpu_custom_call.1} parent=39 // pred_check
          %p341 = pneg %p56
        $region42: #{tpu_custom_call.1} parent=39 // pred_check_branch
          %343 = sbr.rel (%p341) target = $region44
        $region43: #{tpu_custom_call.1} parent=39 // pred_region
          %344 = dma.done [#allocation4], 16
        $region44: #{tpu_custom_call.1} parent=39 // pred_fallthru
          _
        %s345 = sand.u32 %s71, 1
        %s346 = scalar_lea.sflag [#allocation3], %s345
        %s347 = sand.u32 %s71, 1
        %s348 = smul.addr %s347, 32
        %s349 = scalar_lea.vmem [#allocation5], %s348
        // Predicated region
        $region45: #{tpu_custom_call.1} parent=39 // pred_check
          %p350 = pneg %p84
        $region46: #{tpu_custom_call.1} parent=39 // pred_check_branch
          %352 = sbr.rel (%p350) target = $region48
        $region47: #{tpu_custom_call.1} parent=39 // pred_region
          %353 = dma.done %s346, 512
        $region48: #{tpu_custom_call.1} parent=39 // pred_fallthru
          _
        %s354 = sand.u32 %s28, 1
        %s355 = scalar_lea.sflag [#allocation7], %s354
        %s356 = sand.u32 %s99, 1
        %s357 = smul.addr %s356, 32
        %s358 = scalar_lea.vmem [#allocation6], %s357
        // Predicated region
        $region49: #{tpu_custom_call.1} parent=39 // pred_check
          %p359 = pneg %p112
        $region50: #{tpu_custom_call.1} parent=39 // pred_check_branch
          %361 = sbr.rel (%p359) target = $region52
        $region51: #{tpu_custom_call.1} parent=39 // pred_region
          %362 = dma.done %s355, 512
        $region52: #{tpu_custom_call.1} parent=39 // pred_fallthru
          _
        %s363 = sand.u32 %s28, 1
        %s364 = scalar_lea.sflag [#allocation7], %s363
        %s365 = sand.u32 %s127, 1
        %s366 = smul.addr %s365, 8
        %s367 = scalar_lea.vmem [#allocation8], %s366
        // Predicated region
        $region53: #{tpu_custom_call.1} parent=39 // pred_check
          %p368 = pneg %p140
        $region54: #{tpu_custom_call.1} parent=39 // pred_check_branch
          %370 = sbr.rel (%p368) target = $region56
        $region55: #{tpu_custom_call.1} parent=39 // pred_region
          %371 = dma.done %s364, 128
        $region56: #{tpu_custom_call.1} parent=39 // pred_fallthru
          _
        %s372 = sand.u32 %s155, 1
        %s373 = scalar_lea.sflag [#allocation10], %s372
        %s374 = sand.u32 %s155, 1
        %s375 = smul.addr %s374, 8
        %s376 = scalar_lea.vmem [#allocation9], %s375
        // Predicated region
        $region57: #{tpu_custom_call.1} parent=39 // pred_check
          %p377 = pneg %p168
        $region58: #{tpu_custom_call.1} parent=39 // pred_check_branch
          %379 = sbr.rel (%p377) target = $region60
        $region59: #{tpu_custom_call.1} parent=39 // pred_region
          %380 = dma.done %s373, 128
        $region60: #{tpu_custom_call.1} parent=39 // pred_fallthru
          _
        %381 = sfence
        %p382 = pneg %p56
        %p383 = pneg %p53
        %s384 = sand.u32 %s71, 1
        %s385 = scalar_lea.sflag [#allocation3], %s384
        %s386 = sand.u32 %s71, 1
        %s387 = smul.addr %s386, 32
        %s388 = scalar_lea.vmem [#allocation5], %s387
        %p389 = pneg %p84
        %p390 = pneg %p81
        %s391 = sand.u32 %s28, 1
        %s392 = scalar_lea.sflag [#allocation7], %s391
        %s393 = sand.u32 %s99, 1
        %s394 = smul.addr %s393, 32
        %s395 = scalar_lea.vmem [#allocation6], %s394
        %p396 = pneg %p112
        %p397 = pneg %p109
        %s398 = sand.u32 %s28, 1
        %s399 = scalar_lea.sflag [#allocation7], %s398
        %s400 = sand.u32 %s127, 1
        %s401 = smul.addr %s400, 8
        %s402 = scalar_lea.vmem [#allocation8], %s401
        %p403 = pneg %p140
        %p404 = pneg %p137
        %s405 = sand.u32 %s155, 1
        %s406 = scalar_lea.sflag [#allocation10], %s405
        %s407 = sand.u32 %s155, 1
        %s408 = smul.addr %s407, 8
        %s409 = scalar_lea.vmem [#allocation9], %s408
        %p410 = pneg %p168
        %p411 = pneg %p165
        %p412 = pneg %p194
        %p413 = pneg %p191
        %p414 = scmp.lt.s32.totalorder %s32, 1
        %s415 = scalar_select %p414, %s32, 1
        %s416 = scalar_lea.vmem %s5, %s415
        %p417 = pneg %p220
        %p418 = pneg %p217
        %p419 = scmp.lt.s32.totalorder %s32, 1
        %s420 = scalar_select %p419, %s32, 1
        %s421 = scalar_lea.vmem %s6, %s420
        %s422 = smul.u32 4, %s33
        %s423 = smul.u32 4, %s33
        %p424 = scmp.lt.s32.totalorder %s32, 1
        %s425 = scalar_select %p424, %s32, 1
        %s426 = scalar_lea.vmem %s5, %s425
        %p427 = scmp.lt.s32.totalorder %s32, 1
        %s428 = scalar_select %p427, %s32, 1
        %s429 = scalar_lea.vmem %s6, %s428
        %p430 = scmp.eq.s32.totalorder %s33, 0
        // Predicated region
        $region61: #{tpu_custom_call.1} parent=39 // pred_check
          %p431 = pneg %p430
        $region62: #{tpu_custom_call.1} parent=39 // pred_check_branch
          %433 = sbr.rel (%p431) target = $region64
        $region63: #{tpu_custom_call.1} parent=39 // pred_region
          %vm434 = vcmask 0
          %435 = vst.msk [vmem:[%s426] sm:$0x1] %vm434, 0.0
          %436 = vst.msk [vmem:[%s429] sm:$0x1] %vm434, 0.0
        $region64: #{tpu_custom_call.1} parent=39 // pred_fallthru
          _
        %v437 = vld [vmem:[%s349] sm:$0xff]
        %v438 = vld [vmem:[%s349 + $0x8] sm:$0xff]
        %v439 = vld [vmem:[%s349 + $0x10] sm:$0xff]
        %v440 = vld [vmem:[%s349 + $0x18] sm:$0xff]
        %v441 = vld [vmem:[%s358] sm:$0xff]
        %v442 = vld [vmem:[%s358 + $0x8] sm:$0xff]
        %v443 = vld [vmem:[%s358 + $0x10] sm:$0xff]
        %v444 = vld [vmem:[%s358 + $0x18] sm:$0xff]
        %v445 = vsub.f32 %v437, %v441
        %v446 = vsub.f32 %v438, %v442
        %v447 = vsub.f32 %v439, %v443
        %v448 = vsub.f32 %v440, %v444
        %v449 = vand.u32 2147483647, %v445
        %v450 = vand.u32 2147483647, %v446
        %v451 = vand.u32 2147483647, %v447
        %v452 = vand.u32 2147483647, %v448
        %vm453 = vcmp.lt.f32.partialorder %v449, 1.0
        %vm454 = vcmp.lt.f32.partialorder %v450, 1.0
        %vm455 = vcmp.lt.f32.partialorder %v451, 1.0
        %vm456 = vcmp.lt.f32.partialorder %v452, 1.0
        %v457 = vmul.f32 %v445, 0.5
        %v458 = vmul.f32 %v446, 0.5
        %v459 = vmul.f32 %v447, 0.5
        %v460 = vmul.f32 %v448, 0.5
        %v461 = vmul.f32 %v457, %v445
        %v462 = vmul.f32 %v458, %v446
        %v463 = vmul.f32 %v459, %v447
        %v464 = vmul.f32 %v460, %v448
        %v465 = vsub.f32 %v449, 0.5
        %v466 = vsub.f32 %v450, 0.5
        %v467 = vsub.f32 %v451, 0.5
        %v468 = vsub.f32 %v452, 0.5
        %v469 = vsel %vm453, %v461, %v465
        %v470 = vsel %vm454, %v462, %v466
        %v471 = vsel %vm455, %v463, %v467
        %v472 = vsel %vm456, %v464, %v468
        %v473 = vld [vmem:[%s426] sm:$0x1]
        %v474 = vadd.f32 %v469, %v470
        %v475 = vadd.f32 %v474, %v471
        %v476 = vadd.f32 %v475, %v472
        %477 = vadd.xlane.f32.xlu0 %v476
        %v478 = vpop.xlane.xlu0 %477
        %v479 = vrot.slane %v478, 4
        %v480 = vadd.f32 %v478, %v479
        %v481 = vrot.slane %v480, 2
        %v482 = vadd.f32 %v480, %v481
        %v483 = vrot.slane %v482, 1
        %v484 = vadd.f32 %v482, %v483
        %s485 = vtos %v484
        %v486 = vstv %s485
        %v487 = vadd.f32 %v473, %v486
        %vm488 = vcmask 0
        %489 = vst.msk [vmem:[%s426] sm:$0x1] %vm488, %v487
        %v490 = vld [vmem:[%s367] sm:$0xff]
        %v491 = vld [vmem:[%s376] sm:$0xff]
        %s492 = sld [smem:[#allocation2 + %s32]]
        %v493 = vmul.f32 %v490, %v491
        %494 = vadd.xlane.f32.xlu0 %v493
        %v495 = vpop.xlane.xlu0 %494
        %v496 = vrot.slane %v495, 4
        %v497 = vadd.f32 %v495, %v496
        %v498 = vrot.slane %v497, 2
        %v499 = vadd.f32 %v497, %v498
        %v500 = vrot.slane %v499, 1
        %v501 = vadd.f32 %v499, %v500
        %s502 = vtos %v501
        %vm503 = vcmp.eq.f32.partialorder %v491, 0.0
        %v504 = vstv %s492
        %vm505 = vcmp.gt.f32.partialorder %v490, %v504
        %vm506 = vmand %vm503, %vm505
        %v507 = vsub.f32 %v490, %v504
        %v508 = vsel %vm506, %v507, 0.0
        %509 = vadd.xlane.f32.xlu0 %v508
        %v510 = vpop.xlane.xlu0 %509
        %v511 = vrot.slane %v510, 4
        %v512 = vadd.f32 %v510, %v511
        %v513 = vrot.slane %v512, 2
        %v514 = vadd.f32 %v512, %v513
        %v515 = vrot.slane %v514, 1
        %v516 = vadd.f32 %v514, %v515
        %s517 = vtos %v516
        %v518 = vld [vmem:[%s429] sm:$0x1]
        %s519 = sadd.f32 %s502, %s517
        %v520 = vstv %s519
        %v521 = vadd.f32 %v518, %v520
        %522 = vst.msk [vmem:[%s429] sm:$0x1] %vm488, %v521
        %p523 = scmp.lt.s32.totalorder %s32, 1
        %s524 = scalar_select %p523, %s32, 1
        %s525 = scalar_lea.vmem %s5, %s524
        %p526 = scmp.lt.s32.totalorder %s32, 1
        %s527 = scalar_select %p526, %s32, 1
        %s528 = scalar_lea.vmem %s6, %s527
        // Predicated region
        $region65: #{tpu_custom_call.1} parent=39 // pred_check
          %p529 = pneg %p191
        $region66: #{tpu_custom_call.1} parent=39 // pred_check_branch
          %531 = sbr.rel (%p529) target = $region68
        $region67: #{tpu_custom_call.1} parent=39 // pred_region
          _
        $region68: #{tpu_custom_call.1} parent=39 // pred_fallthru
          _
        // Predicated region
        $region69: #{tpu_custom_call.1} parent=39 // pred_check
          %p532 = pneg %p217
        $region70: #{tpu_custom_call.1} parent=39 // pred_check_branch
          %534 = sbr.rel (%p532) target = $region72
        $region71: #{tpu_custom_call.1} parent=39 // pred_region
          _
        $region72: #{tpu_custom_call.1} parent=39 // pred_fallthru
          _
      $region40: #{tpu_custom_call.1} parent=5 // pred_fallthru
        _
      %p535 = scmp.le.s32.totalorder 2, %s23
      // Predicated region
      $region73: #{tpu_custom_call.1} parent=5 // pred_check
        %p536 = pneg %p535
      $region74: #{tpu_custom_call.1} parent=5 // pred_check_branch
        %538 = sbr.rel (%p536) target = $region76
      $region75: #{tpu_custom_call.1} parent=5 // pred_region
        %s539 = ssub.s32 %s23, 2
        // Predicated region
        $region77: #{tpu_custom_call.1} parent=75 // pred_check
          %p540 = pneg %p197
        $region78: #{tpu_custom_call.1} parent=75 // pred_check_branch
          %542 = sbr.rel (%p540) target = $region80
        $region79: #{tpu_custom_call.1} parent=75 // pred_region
          %p543 = scmp.lt.s32.totalorder %s34, 1
          %s544 = scalar_select %p543, %s34, 1
          %s545 = scalar_lea.vmem %s5, %s544
        $region80: #{tpu_custom_call.1} parent=75 // pred_fallthru
          _
        // Predicated region
        $region81: #{tpu_custom_call.1} parent=75 // pred_check
          %p546 = pneg %p223
        $region82: #{tpu_custom_call.1} parent=75 // pred_check_branch
          %548 = sbr.rel (%p546) target = $region84
        $region83: #{tpu_custom_call.1} parent=75 // pred_region
          %p549 = scmp.lt.s32.totalorder %s34, 1
          %s550 = scalar_select %p549, %s34, 1
          %s551 = scalar_lea.vmem %s6, %s550
        $region84: #{tpu_custom_call.1} parent=75 // pred_fallthru
          _
      $region76: #{tpu_custom_call.1} parent=5 // pred_fallthru
        _
    $region6: #{tpu_custom_call.1} parent=1 // loop_footer
      %s27 = sadd.s32 1, %s23
    $region7: #{tpu_custom_call.1} parent=1 // loop_footer_branch
      %22 = sbr.rel target = $region3
    $region8: #{tpu_custom_call.1} parent=1 // loop_exit
      _
    %552 = vsyncpa [#allocation3], 1
    %s553 = scalar_lea.sflag [#allocation3], 1
    %554 = vsyncpa %s553, 1
    %555 = vsyncpa [#allocation7], 1
    %s556 = scalar_lea.sflag [#allocation7], 1
    %557 = vsyncpa %s556, 1
    %558 = vsyncpa [#allocation10], 1
    %s559 = scalar_lea.sflag [#allocation10], 1
    %560 = vsyncpa %s559, 1
    %561 = vsyncpa [#allocation4], 1
    %s562 = scalar_lea.sflag [#allocation4], 1
    %563 = vsyncpa %s562, 1

</llo_original>
